<compile_context>
chip_gen: v7x
topology: tpu7x:2x2x1
jax: 0.10.0
libtpu: 0.0.40
codegen_flags: <defaults>
</compile_context>

<pallas_src>
import math
import functools
import numpy as np
import jax
import jax.numpy as jnp
from jax.experimental import pallas as pl
from jax.experimental.pallas import tpu as pltpu


def _erf(x):
    # Abramowitz & Stegun 7.1.26 rational approximation (max abs err ~1.5e-7);
    # matches PyTorch's exact (erf-based) nn.GELU to float32 precision.
    a1, a2, a3, a4, a5 = 0.254829592, -0.284496736, 1.421413741, -1.453152027, 1.061405429
    p = 0.3275911
    ax = jnp.abs(x)
    t = 1.0 / (1.0 + p * ax)
    poly = ((((a5 * t + a4) * t + a3) * t + a2) * t + a1) * t
    y = 1.0 - poly * jnp.exp(-ax * ax)
    return jnp.where(x >= 0, y, -y)


def _gelu(x):
    # exact GELU: x * 0.5 * (1 + erf(x / sqrt(2)))  (PyTorch nn.GELU() default)
    return 0.5 * x * (1.0 + _erf(x * (1.0 / math.sqrt(2.0))))


# --------------------------------------------------------------------------- #
# Kernels
# --------------------------------------------------------------------------- #
def time_map_kernel(time_ref, freqs_ref, wt_sin_ref, wt_cos_ref, bt_ref, wm_t_ref,
                    tmap_ref):
    """N-independent time path, computed once on TILE_N (already tiled) rows.

    tmap = GELU(concat(sin, cos)(time * freqs) @ Wt + bt) @ Wm[:dim]
    (concat @ Wt is decomposed as sin @ Wt[:half] + cos @ Wt[half:]).
    """
    arg = time_ref[...] * freqs_ref[...]                       # (T,1)*(1,half) -> (T,half)
    te = (jnp.dot(jnp.sin(arg), wt_sin_ref[...], preferred_element_type=jnp.float32)
          + jnp.dot(jnp.cos(arg), wt_cos_ref[...], preferred_element_type=jnp.float32)
          + bt_ref[...])
    te = _gelu(te)                                             # (T, dim), f32
    tmap_ref[...] = jnp.dot(te, wm_t_ref[...], preferred_element_type=jnp.float32)


def pos_map_kernel(pos_ref, tmap_ref, wp_ref, bp_ref, wm_p_ref, bm_ref, out_ref):
    """Row-tiled main kernel: out = t_map_tiled + GELU(pos @ Wp + bp) @ Wm[dim:] + bm."""
    pe = jnp.dot(pos_ref[...], wp_ref[...],
                 preferred_element_type=jnp.float32) + bp_ref[...]
    pe = _gelu(pe)                                             # f32 elementwise math
    out_ref[...] = (tmap_ref[...]
                    + jnp.dot(pe.astype(wm_p_ref.dtype), wm_p_ref[...],
                              preferred_element_type=jnp.float32)
                    + bm_ref[...])


# --------------------------------------------------------------------------- #
# Wrapper
# --------------------------------------------------------------------------- #
def _choose_tile_rows(batch, p2, max_rows):
    """Largest row-tile that divides N = batch*p2, is a multiple of batch
    (so every tile starts at a multiple of batch) and fits the row cap.
    Prefer multiples of 8 (sublane alignment) when the tile is a strict sub-block."""
    n = batch * p2
    if n <= max_rows:
        return n
    best = None
    for k in range(1, p2 + 1):
        if p2 % k == 0:
            t = batch * k
            if t <= max_rows and t % 8 == 0:
                best = t
    if best is None:
        for k in range(1, p2 + 1):
            if p2 % k == 0 and batch * k <= max_rows:
                best = batch * k
    return best if best is not None else batch


def make_params(key, dim, patch_divider):
    p2 = patch_divider * patch_divider
    ks = jax.random.split(key, 3)

    def linear(k, fan_in, fan_out):
        bound = 1.0 / math.sqrt(fan_in)
        kw, kb = jax.random.split(k)
        w = jax.random.uniform(kw, (fan_in, fan_out), jnp.float32, -bound, bound)
        b = jax.random.uniform(kb, (1, fan_out), jnp.float32, -bound, bound)
        return w, b

    wt, bt = linear(ks[0], dim, dim)          # time Linear(dim, dim)
    wp, bp = linear(ks[1], p2, dim)           # pos  Linear(P^2, dim)
    wm, bm = linear(ks[2], 2 * dim, 4 * dim)  # mapping Linear(2*dim, 4*dim)
    return dict(wt=wt, bt=bt, wp=wp, bp=bp, wm=wm, bm=bm)


def embedding_forward(time, pos, params, dim, patch_divider,
                      *, matmul_dtype=jnp.float32, max_tile_rows=512):
    assert dim % 2 == 0 and dim >= 4, \
        "dim must be even and >= 4 (SinusoidalPosEmb divides by dim//2 - 1)"
    p2 = patch_divider * patch_divider
    B = time.shape[0]
    N = pos.shape[0]
    assert N == B * p2, "pos must have B * patch_divider^2 rows"
    half = dim // 2
    edim = 4 * dim

    # max_tile_rows=512 is conservative for v7x's 64 MiB VMEM; double-buffered
    # pos+out tiles stay well inside the default scoped VMEM on all generations.
    tile_n = _choose_tile_rows(B, p2, max_tile_rows)
    grid_n = N // tile_n

    # Pre-split weight slices in the wrapper (free; avoids in-kernel VMEM slicing).
    wt_sin = params["wt"][:half, :]
    wt_cos = params["wt"][half:, :]
    wm_t = params["wm"][:dim, :]
    wm_p = params["wm"][dim:, :]

    # Precompute sinusoidal freqs row and the per-tile replicated time vector.
    freqs = jnp.exp(-(math.log(10000.0) / (half - 1))
                    * jnp.arange(half, dtype=jnp.float32)).reshape(1, half)
    time_tiled = jnp.tile(time.reshape(B, 1).astype(jnp.float32), (tile_n // B, 1))

    vmem = lambda: pl.BlockSpec(memory_space=pltpu.MemorySpace.VMEM)

    # ---- tiny grid-less precursor: t_map_tiled (tile_n, 4*dim), f32, computed once.
    t_map_tiled = pl.pallas_call(
        time_map_kernel,
        out_shape=jax.ShapeDtypeStruct((tile_n, edim), jnp.float32),
        in_specs=[vmem() for _ in range(6)],
        out_specs=vmem(),
    )(time_tiled, freqs, wt_sin, wt_cos, params["bt"], wm_t)

    # ---- main row-tiled kernel over N (auto double-buffered pos/out DMA).
    pos_m = pos.astype(matmul_dtype)
    wp_m = params["wp"].astype(matmul_dtype)
    wm_p_m = wm_p.astype(matmul_dtype)

    itemsize = jnp.dtype(matmul_dtype).itemsize
    cost = pl.CostEstimate(
        flops=2 * N * p2 * dim + 2 * N * dim * edim + 3 * N * edim,
        transcendentals=N * dim,
        bytes_accessed=(itemsize * (N * p2 + p2 * dim + dim * edim)
                        + 4 * (N * edim + tile_n * edim + dim + edim)),
    )

    full = lambda shape: pl.BlockSpec(shape, lambda i: (0, 0))

    return pl.pallas_call(
        pos_map_kernel,
        out_shape=jax.ShapeDtypeStruct((N, edim), jnp.float32),
        grid=(grid_n,),
        in_specs=[
            pl.BlockSpec((tile_n, p2), lambda i: (i, 0)),   # pos: pipelined row tiles
            full((tile_n, edim)),                           # t_map_tiled (resident, same block)
            full((p2, dim)),                                # Wp
            full((1, dim)),                                 # bp
            full((dim, edim)),                              # Wm[dim:]
            full((1, edim)),                                # bm
        ],
        out_specs=pl.BlockSpec((tile_n, edim), lambda i: (i, 0)),
        compiler_params=pltpu.CompilerParams(
            dimension_semantics=("parallel",)),             # v7x: shard row tiles over 2 TCs
        cost_estimate=cost,
    )(pos_m, t_map_tiled, wp_m, params["bp"], wm_p_m, params["bm"])


def embedding_reference(time, pos, params, dim, patch_divider):
    """Pure-JAX reference mirroring the PyTorch forward (torch.tile block order)."""
    half = dim // 2
    freqs = jnp.exp(-(math.log(10000.0) / (half - 1))
                    * jnp.arange(half, dtype=jnp.float32))
    arg = time[:, None] * freqs[None, :]
    sin_emb = jnp.concatenate([jnp.sin(arg), jnp.cos(arg)], axis=-1)
    te = jax.nn.gelu(sin_emb @ params["wt"] + params["bt"], approximate=False)
    pe = jax.nn.gelu(pos @ params["wp"] + params["bp"], approximate=False)
    tiled = jnp.tile(te, (patch_divider * patch_divider, 1))
    cat = jnp.concatenate([tiled, pe], axis=-1)
    return cat @ params["wm"] + params["bm"]


if __name__ == "__main__":
    dim = 32
    patch_divider = 4
    B = 2
    p2 = patch_divider * patch_divider
    N = B * p2

    key = jax.random.PRNGKey(0)
    k_par, k_time, k_pos = jax.random.split(key, 3)

    params = make_params(k_par, dim, patch_divider)
    time = jax.random.uniform(k_time, (B,), jnp.float32, 0.0, 1000.0)   # diffusion steps
    pos = jax.random.normal(k_pos, (N, p2), jnp.float32)                # position features

    ref = embedding_reference(time, pos, params, dim, patch_divider)

    # f32 path (all generations) -- tight tolerance vs. reference.
    out = jax.block_until_ready(
        embedding_forward(time, pos, params, dim, patch_divider))
    assert out.shape == (N, 4 * dim), out.shape
    assert np.allclose(np.asarray(out), np.asarray(ref), atol=1e-4, rtol=1e-4), \
        np.max(np.abs(np.asarray(out) - np.asarray(ref)))

    # bf16 MXU-operand path (recommended for v6e/v7x); accumulation/GELU stay f32,
    # so only operand-rounding error remains -> loose tolerance.
    out_bf16 = jax.block_until_ready(
        embedding_forward(time, pos, params, dim, patch_divider,
                          matmul_dtype=jnp.bfloat16))
    assert np.allclose(np.asarray(out_bf16), np.asarray(ref), atol=1e-1, rtol=1e-1), \
        np.max(np.abs(np.asarray(out_bf16) - np.asarray(ref)))

    print("KERNEL_OK")
</pallas_src>

<mosaic_0001>
module attributes {stable_mosaic.version = 11 : i64} {
  func.func @time_map_kernel(%arg0: memref<32x1xf32, #tpu.memory_space<vmem>>, %arg1: memref<1x16xf32, #tpu.memory_space<vmem>>, %arg2: memref<16x32xf32, #tpu.memory_space<vmem>>, %arg3: memref<16x32xf32, #tpu.memory_space<vmem>>, %arg4: memref<1x32xf32, #tpu.memory_space<vmem>>, %arg5: memref<32x128xf32, #tpu.memory_space<vmem>>, %arg6: memref<32x128xf32, #tpu.memory_space<vmem>>) attributes {dimension_semantics = [], scalar_prefetch = 0 : i64, scratch_operands = 0 : i64, tpu.core_type = #tpu.core_type<tc>} {
    %c0 = arith.constant 0 : index
    %c0_0 = arith.constant 0 : index
    %0 = vector.load %arg0[%c0, %c0_0] : memref<32x1xf32, #tpu.memory_space<vmem>>, vector<32x1xf32>
    %c0_1 = arith.constant 0 : index
    %c0_2 = arith.constant 0 : index
    %1 = vector.load %arg1[%c0_1, %c0_2] : memref<1x16xf32, #tpu.memory_space<vmem>>, vector<1x16xf32>
    %2 = vector.broadcast %0 : vector<32x1xf32> to vector<32x16xf32>
    %3 = vector.broadcast %1 : vector<1x16xf32> to vector<32x16xf32>
    %4 = arith.mulf %2, %3 : vector<32x16xf32>
    %5 = math.sin %4 : vector<32x16xf32>
    %c0_3 = arith.constant 0 : index
    %c0_4 = arith.constant 0 : index
    %6 = vector.load %arg2[%c0_3, %c0_4] : memref<16x32xf32, #tpu.memory_space<vmem>>, vector<16x32xf32>
    %cst = arith.constant dense<0.000000e+00> : vector<32x32xf32>
    %7 = tpu.matmul %5, %6, %cst {dimension_numbers = #tpu.dot_dimension_numbers<[1], [0], [0], [1], [0, 0, 1, 1], [], []>} : vector<32x16xf32>, vector<16x32xf32>, vector<32x32xf32> -> vector<32x32xf32>
    %8 = math.cos %4 : vector<32x16xf32>
    %c0_5 = arith.constant 0 : index
    %c0_6 = arith.constant 0 : index
    %9 = vector.load %arg3[%c0_5, %c0_6] : memref<16x32xf32, #tpu.memory_space<vmem>>, vector<16x32xf32>
    %cst_7 = arith.constant dense<0.000000e+00> : vector<32x32xf32>
    %10 = tpu.matmul %8, %9, %cst_7 {dimension_numbers = #tpu.dot_dimension_numbers<[1], [0], [0], [1], [0, 0, 1, 1], [], []>} : vector<32x16xf32>, vector<16x32xf32>, vector<32x32xf32> -> vector<32x32xf32>
    %11 = arith.addf %7, %10 : vector<32x32xf32>
    %c0_8 = arith.constant 0 : index
    %c0_9 = arith.constant 0 : index
    %12 = vector.load %arg4[%c0_8, %c0_9] : memref<1x32xf32, #tpu.memory_space<vmem>>, vector<1x32xf32>
    %13 = vector.broadcast %12 : vector<1x32xf32> to vector<32x32xf32>
    %14 = arith.addf %11, %13 : vector<32x32xf32>
    %cst_10 = arith.constant 5.000000e-01 : f32
    %15 = vector.broadcast %cst_10 : f32 to vector<32x32xf32>
    %16 = arith.mulf %15, %14 : vector<32x32xf32>
    %cst_11 = arith.constant 0.707106769 : f32
    %17 = vector.broadcast %cst_11 : f32 to vector<32x32xf32>
    %18 = arith.mulf %14, %17 : vector<32x32xf32>
    %19 = math.absf %18 : vector<32x32xf32>
    %cst_12 = arith.constant 0.327591091 : f32
    %20 = vector.broadcast %cst_12 : f32 to vector<32x32xf32>
    %21 = arith.mulf %20, %19 : vector<32x32xf32>
    %cst_13 = arith.constant 1.000000e+00 : f32
    %22 = vector.broadcast %cst_13 : f32 to vector<32x32xf32>
    %23 = arith.addf %22, %21 : vector<32x32xf32>
    %cst_14 = arith.constant 1.000000e+00 : f32
    %24 = vector.broadcast %cst_14 : f32 to vector<32x32xf32>
    %25 = arith.divf %24, %23 : vector<32x32xf32>
    %cst_15 = arith.constant 1.06140542 : f32
    %26 = vector.broadcast %cst_15 : f32 to vector<32x32xf32>
    %27 = arith.mulf %26, %25 : vector<32x32xf32>
    %cst_16 = arith.constant -1.45315206 : f32
    %28 = vector.broadcast %cst_16 : f32 to vector<32x32xf32>
    %29 = arith.addf %27, %28 : vector<32x32xf32>
    %30 = arith.mulf %29, %25 : vector<32x32xf32>
    %cst_17 = arith.constant 1.42141378 : f32
    %31 = vector.broadcast %cst_17 : f32 to vector<32x32xf32>
    %32 = arith.addf %30, %31 : vector<32x32xf32>
    %33 = arith.mulf %32, %25 : vector<32x32xf32>
    %cst_18 = arith.constant -0.284496725 : f32
    %34 = vector.broadcast %cst_18 : f32 to vector<32x32xf32>
    %35 = arith.addf %33, %34 : vector<32x32xf32>
    %36 = arith.mulf %35, %25 : vector<32x32xf32>
    %cst_19 = arith.constant 0.254829586 : f32
    %37 = vector.broadcast %cst_19 : f32 to vector<32x32xf32>
    %38 = arith.addf %36, %37 : vector<32x32xf32>
    %39 = arith.mulf %38, %25 : vector<32x32xf32>
    %cst_20 = arith.constant 0.000000e+00 : f32
    %40 = vector.broadcast %cst_20 : f32 to vector<32x32xf32>
    %41 = arith.subf %40, %19 : vector<32x32xf32>
    %42 = arith.mulf %41, %19 : vector<32x32xf32>
    %43 = math.exp %42 : vector<32x32xf32>
    %44 = arith.mulf %39, %43 : vector<32x32xf32>
    %cst_21 = arith.constant 1.000000e+00 : f32
    %45 = vector.broadcast %cst_21 : f32 to vector<32x32xf32>
    %46 = arith.subf %45, %44 : vector<32x32xf32>
    %cst_22 = arith.constant 0.000000e+00 : f32
    %47 = vector.broadcast %cst_22 : f32 to vector<32x32xf32>
    %48 = arith.cmpf oge, %18, %47 : vector<32x32xf32>
    %cst_23 = arith.constant 0.000000e+00 : f32
    %49 = vector.broadcast %cst_23 : f32 to vector<32x32xf32>
    %50 = arith.subf %49, %46 : vector<32x32xf32>
    %51 = arith.select %48, %46, %50 : vector<32x32xi1>, vector<32x32xf32>
    %cst_24 = arith.constant 1.000000e+00 : f32
    %52 = vector.broadcast %cst_24 : f32 to vector<32x32xf32>
    %53 = arith.addf %52, %51 : vector<32x32xf32>
    %54 = arith.mulf %16, %53 : vector<32x32xf32>
    %c0_25 = arith.constant 0 : index
    %c0_26 = arith.constant 0 : index
    %55 = vector.load %arg5[%c0_25, %c0_26] : memref<32x128xf32, #tpu.memory_space<vmem>>, vector<32x128xf32>
    %cst_27 = arith.constant dense<0.000000e+00> : vector<32x128xf32>
    %56 = tpu.matmul %54, %55, %cst_27 {dimension_numbers = #tpu.dot_dimension_numbers<[1], [0], [0], [1], [0, 0, 1, 1], [], []>} : vector<32x32xf32>, vector<32x128xf32>, vector<32x128xf32> -> vector<32x128xf32>
    %c0_28 = arith.constant 0 : index
    %c0_29 = arith.constant 0 : index
    %57 = vector.load %arg6[%c0_28, %c0_29] : memref<32x128xf32, #tpu.memory_space<vmem>>, vector<32x128xf32>
    tpu.vector_store %arg6[%c0_28, %c0_29], %56 {strides = array<i32>} : memref<32x128xf32, #tpu.memory_space<vmem>>, vector<32x128xf32>,
    return
  }
}

</mosaic_0001>

<llo_original>
// kernel: tpu_custom_call.1
$region0: #{tpu_custom_call.1}
  #allocation0 [shape = 'u32[]', space=smem, size = 0x4, offset = 0x4, fixed_abs, tag = 'smem constant byte address 0x4 - core index']
  #allocation1 [shape = 'u32[144,128]{1,0:T(1,128)}', space=vmem, size = 0x12000, scoped, tag = 'internal scratch']
  %s0 = inlined_call_operand.vmem [shape: f32[32,1], index: 0, kind: input, shape index: {}]
  %s1 = inlined_call_operand.vmem [shape: f32[1,16], index: 1, kind: input, shape index: {}]
  %s2 = inlined_call_operand.vmem [shape: f32[16,32], index: 2, kind: input, shape index: {}]
  %s3 = inlined_call_operand.hbm [shape: f32[16,32], index: 3, kind: input, shape index: {}]
  %s4 = inlined_call_operand.vmem [shape: f32[1,32], index: 4, kind: input, shape index: {}]
  %s5 = inlined_call_operand.vmem [shape: f32[32,128], index: 5, kind: input, shape index: {}]
  %s6 = inlined_call_operand.hbm [shape: f32[32,128], index: 6, kind: output, shape index: {}]
  %s7 = sld [smem:[#allocation0]]
  $region38: #{tpu_custom_call.1} parent=0
    _
  %s9 = ssub.s32 1, %s7
  %s10 = scalar_select 0, %s9, %s7
  $region1: #{tpu_custom_call.1} parent=0
    #allocation2 [shape = 'u8[8192]{0}', space=vmem, size = 0x2000, scoped, tag = 'input window, operand 3, single buffered']
    #allocation3 [shape = 's32[1]{0}', space=sflag, size = 0x4, scoped, tag = 'scoped memory for tpu_custom_call.1']
    #allocation4 [shape = 's32[1]{0}', space=sflag, size = 0x4, scoped, tag = 'scoped memory for tpu_custom_call.1']
    #allocation5 [shape = 'u8[16384]{0}', space=vmem, size = 0x4000, scoped, tag = 'output window, operand 0, single buffered']
    %11 = vsyncpa [#allocation3], 0
    %12 = vsyncpa [#allocation4], 0
    // Predicated region
    $region2: #{tpu_custom_call.1} parent=1 // pred_check
      _
    $region3: #{tpu_custom_call.1} parent=1 // pred_check_branch
      %14 = sbr.rel (0) target = $region5
    $region4: #{tpu_custom_call.1} parent=1 // pred_region
      _
    $region5: #{tpu_custom_call.1} parent=1 // pred_fallthru
      _
    // Predicated region
    $region6: #{tpu_custom_call.1} parent=1 // pred_check
      _
    $region7: #{tpu_custom_call.1} parent=1 // pred_check_branch
      %16 = sbr.rel (0) target = $region9
    $region8: #{tpu_custom_call.1} parent=1 // pred_region
      _
    $region9: #{tpu_custom_call.1} parent=1 // pred_fallthru
      _
    // Predicated region
    $region10: #{tpu_custom_call.1} parent=1 // pred_check
      _
    $region11: #{tpu_custom_call.1} parent=1 // pred_check_branch
      %18 = sbr.rel (0) target = $region13
    $region12: #{tpu_custom_call.1} parent=1 // pred_region
      _
    $region13: #{tpu_custom_call.1} parent=1 // pred_fallthru
      _
    // Predicated region
    $region14: #{tpu_custom_call.1} parent=1 // pred_check
      _
    $region15: #{tpu_custom_call.1} parent=1 // pred_check_branch
      %20 = sbr.rel (0) target = $region17
    $region16: #{tpu_custom_call.1} parent=1 // pred_region
      %s22 = ssub.s32 256, 256
      %23 = vsyncadd [#allocation3], %s22
      %s24 = sshll.u32 [#allocation2], 4
      %s25 = int_to_ptr.vmem [resolvable:$true] %s24
      %30 = dma.hbm_to_vmem [thread:$0]  %s3, 256, %s25, [#allocation3], 128, 128, 8
    $region17: #{tpu_custom_call.1} parent=1 // pred_fallthru
      _
    // Predicated region
    $region18: #{tpu_custom_call.1} parent=1 // pred_check
      _
    $region19: #{tpu_custom_call.1} parent=1 // pred_check_branch
      %32 = sbr.rel (0) target = $region21
    $region20: #{tpu_custom_call.1} parent=1 // pred_region
      _
    $region21: #{tpu_custom_call.1} parent=1 // pred_fallthru
      _
    // Predicated region
    $region22: #{tpu_custom_call.1} parent=1 // pred_check
      _
    $region23: #{tpu_custom_call.1} parent=1 // pred_check_branch
      %34 = sbr.rel (0) target = $region25
    $region24: #{tpu_custom_call.1} parent=1 // pred_region
      _
    $region25: #{tpu_custom_call.1} parent=1 // pred_fallthru
      _
    // Predicated region
    $region26: #{tpu_custom_call.1} parent=1 // pred_check
      _
    $region27: #{tpu_custom_call.1} parent=1 // pred_check_branch
      %36 = sbr.rel (0) target = $region29
    $region28: #{tpu_custom_call.1} parent=1 // pred_region
      %37 = dma.done [#allocation3], 256
    $region29: #{tpu_custom_call.1} parent=1 // pred_fallthru
      _
    %v38 = vld [vmem:[%s0] sm:$0xff]
    %v39 = vld [vmem:[%s0 + $0x8] sm:$0xff]
    %v40 = vld [vmem:[%s0 + $0x10] sm:$0xff]
    %v41 = vld [vmem:[%s0 + $0x18] sm:$0xff]
    %v42 = vld [vmem:[%s1] sm:$0x1]
    %44 = vset.pattern.permute.xlu0 0
    %45 = vperm.xlu0 %44, %v38
    %v46 = vpop.permute.xlu0 %45
    %49 = vset.pattern.permute.xlu0 0
    %50 = vperm.xlu0 %49, %v39
    %v51 = vpop.permute.xlu0 %50
    %54 = vset.pattern.permute.xlu0 0
    %55 = vperm.xlu0 %54, %v40
    %v56 = vpop.permute.xlu0 %55
    %59 = vset.pattern.permute.xlu0 0
    %60 = vperm.xlu0 %59, %v41
    %v61 = vpop.permute.xlu0 %60
    %v64 = vlaneseq
    %v65 = vshrl.u32 %v64, 7
    %v66 = vsub.s32 0, %v65
    %v67 = vrot.slane %v42, %v66
    %v69 = vmul.f32 %v46, %v67
    %v70 = vmul.f32 %v51, %v67
    %v71 = vmul.f32 %v56, %v67
    %v72 = vmul.f32 %v61, %v67
    %v73 = vand.u32 2147483647, %v69
    %vm74 = vcmp.le.f32.partialorder %v73, 0.7853982
    %vm75 = vcmp.lt.s32.totalorder %v69, 0
    %v76 = vand.u32 %v69, 2139095040
    %v77 = vshrl.u32 %v76, 23
    %v78 = vsub.s32 %v77, 127
    %v79 = vand.u32 2147483647, %v69
    %v80 = vand.u32 %v79, 8388607
    %v81 = vor.u32 %v80, 8388608
    %v82 = vsub.s32 0, %v81
    %v83 = vadd.s32 %v78, 1
    %vm84 = vcmp.gt.s32.totalorder %v83, 0
    %v85 = vsel %vm84, %v83, 0
    %v86 = vshrl.u32 %v85, 5
    %v87 = vand.u32 %v85, 31
    %v88 = vsub.s32 32, %v87
    %v89 = vshrl.u32 683565275, %v88
    %v90 = vshll.u32 683565275, %v87
    %v91 = vshrl.u32 2475754826, %v88
    %v92 = vor.u32 %v90, %v91
    %v93 = vshll.u32 2475754826, %v87
    %v94 = vshrl.u32 2131351028, %v88
    %v95 = vor.u32 %v93, %v94
    %v96 = vshll.u32 2131351028, %v87
    %v97 = vshrl.u32 2102212464, %v88
    %v98 = vor.u32 %v96, %v97
    %v99 = vshll.u32 2102212464, %v87
    %v100 = vshrl.u32 920167782, %v88
    %v101 = vor.u32 %v99, %v100
    %v102 = vshll.u32 920167782, %v87
    %v103 = vshrl.u32 1326507024, %v88
    %v104 = vor.u32 %v102, %v103
    %vm105 = vcmp.lt.s32.totalorder %v86, 1
    %vm106 = vcmp.lt.s32.totalorder %v86, 2
    %vm107 = vcmp.lt.s32.totalorder %v86, 3
    %vm108 = vcmp.lt.s32.totalorder %v86, 4
    %v109 = vsel %vm105, %v89, %v92
    %v110 = vsel %vm108, %v98, 2102212464
    %v111 = vsel %vm107, %v95, %v110
    %v112 = vsel %vm106, %v109, %v111
    %v113 = vsel %vm105, %v92, %v95
    %v114 = vsel %vm108, %v101, 920167782
    %v115 = vsel %vm107, %v98, %v114
    %v116 = vsel %vm106, %v113, %v115
    %v117 = vsel %vm105, %v95, %v98
    %v118 = vsel %vm108, %v104, 1326507024
    %v119 = vsel %vm107, %v101, %v118
    %v120 = vsel %vm106, %v117, %v119
    %v121 = vshll.u32 %v81, 8
    %v122 = vmul.u32.u64.compose %v121, %v120
    %v123 = vextract.low.u32 %v122
    %v124 = vextract.high.u32 %v122
    %v125 = vmul.u32.u64.compose %v121, %v116
    %v126 = vextract.low.u32 %v125
    %v127 = vextract.high.u32 %v125
    %v128 = vmul.u32 %v121, %v112
    %v129 = vadd.s32 %v124, %v126
    %vm130 = vc.u32 %v124, %v126
    %v131 = vadd.s32 %v127, 1
    %v132 = vsel %vm130, %v131, %v127
    %v133 = vadd.s32 %v128, %v132
    %v134 = vadd.s32 %v133, 536870912
    %v135 = vshrl.u32 %v134, 30
    %v136 = vshll.u32 %v135, 30
    %v137 = vsub.s32 %v133, %v136
    %vm138 = vcmp.lt.s32.totalorder %v137, 0
    %v139 = vsub.s32 0, %v137
    %v140 = vsel %vm138, %v139, %v137
    %v141 = vclz %v140
    %v142 = vsub.s32 %v141, 2
    %vm143 = vcmp.gt.s32.totalorder 0, %v142
    %v144 = vsel %vm143, 0, %v142
    %v145 = vsub.s32 32, %v144
    %v146 = vshll.u32 %v137, %v144
    %v147 = vshrl.u32 %v129, %v145
    %v148 = vor.u32 %v146, %v147
    %v149 = vsub.s32 4294967266, %v144
    %v150 = vadd.s32 %v149, 127
    %v151 = vshll.u32 %v150, 23
    %v152 = vor.u32 4788187, %v151
    %v153 = vand.u32 2147483647, %v152
    %v155 = vcvt.s32.f32 %v148
    %v156 = vmul.f32 %v155, %v153
    %v157 = vxor.u32 %v156, 2147483648
    %v158 = vsel %vm75, %v157, %v156
    %v159 = vsub.s32 4, %v135
    %v160 = vsel %vm75, %v159, %v135
    %v161 = vsel %vm74, %v69, %v158
    %v162 = vsel %vm74, 0, %v160
    %v163 = vcosq.f32.pop %v161
    %v164 = vsinq.f32.pop %v161
    %vm165 = vweird.f32 %v69
    %v166 = vadd.s32 %v162, 3
    %v167 = vand.u32 %v166, 3
    %vm168 = vcmp.lt.s32.totalorder %v167, 2
    %vm169 = vcmp.eq.s32.totalorder %v167, 0
    %v170 = vxor.u32 %v164, 2147483648
    %v171 = vsel %vm169, %v163, %v170
    %vm172 = vcmp.eq.s32.totalorder %v167, 2
    %v173 = vxor.u32 %v163, 2147483648
    %v174 = vsel %vm172, %v173, %v164
    %v175 = vsel %vm168, %v171, %v174
    %v176 = vsel %vm165, nan, %v175
    %v177 = vand.u32 2147483647, %v70
    %vm178 = vcmp.le.f32.partialorder %v177, 0.7853982
    %vm179 = vcmp.lt.s32.totalorder %v70, 0
    %v180 = vand.u32 %v70, 2139095040
    %v181 = vshrl.u32 %v180, 23
    %v182 = vsub.s32 %v181, 127
    %v183 = vand.u32 2147483647, %v70
    %v184 = vand.u32 %v183, 8388607
    %v185 = vor.u32 %v184, 8388608
    %v186 = vsub.s32 0, %v185
    %v187 = vadd.s32 %v182, 1
    %vm188 = vcmp.gt.s32.totalorder %v187, 0
    %v189 = vsel %vm188, %v187, 0
    %v190 = vshrl.u32 %v189, 5
    %v191 = vand.u32 %v189, 31
    %v192 = vsub.s32 32, %v191
    %v193 = vshrl.u32 683565275, %v192
    %v194 = vshll.u32 683565275, %v191
    %v195 = vshrl.u32 2475754826, %v192
    %v196 = vor.u32 %v194, %v195
    %v197 = vshll.u32 2475754826, %v191
    %v198 = vshrl.u32 2131351028, %v192
    %v199 = vor.u32 %v197, %v198
    %v200 = vshll.u32 2131351028, %v191
    %v201 = vshrl.u32 2102212464, %v192
    %v202 = vor.u32 %v200, %v201
    %v203 = vshll.u32 2102212464, %v191
    %v204 = vshrl.u32 920167782, %v192
    %v205 = vor.u32 %v203, %v204
    %v206 = vshll.u32 920167782, %v191
    %v207 = vshrl.u32 1326507024, %v192
    %v208 = vor.u32 %v206, %v207
    %vm209 = vcmp.lt.s32.totalorder %v190, 1
    %vm210 = vcmp.lt.s32.totalorder %v190, 2
    %vm211 = vcmp.lt.s32.totalorder %v190, 3
    %vm212 = vcmp.lt.s32.totalorder %v190, 4
    %v213 = vsel %vm209, %v193, %v196
    %v214 = vsel %vm212, %v202, 2102212464
    %v215 = vsel %vm211, %v199, %v214
    %v216 = vsel %vm210, %v213, %v215
    %v217 = vsel %vm209, %v196, %v199
    %v218 = vsel %vm212, %v205, 920167782
    %v219 = vsel %vm211, %v202, %v218
    %v220 = vsel %vm210, %v217, %v219
    %v221 = vsel %vm209, %v199, %v202
    %v222 = vsel %vm212, %v208, 1326507024
    %v223 = vsel %vm211, %v205, %v222
    %v224 = vsel %vm210, %v221, %v223
    %v225 = vshll.u32 %v185, 8
    %v226 = vmul.u32.u64.compose %v225, %v224
    %v227 = vextract.low.u32 %v226
    %v228 = vextract.high.u32 %v226
    %v229 = vmul.u32.u64.compose %v225, %v220
    %v230 = vextract.low.u32 %v229
    %v231 = vextract.high.u32 %v229
    %v232 = vmul.u32 %v225, %v216
    %v233 = vadd.s32 %v228, %v230
    %vm234 = vc.u32 %v228, %v230
    %v235 = vadd.s32 %v231, 1
    %v236 = vsel %vm234, %v235, %v231
    %v237 = vadd.s32 %v232, %v236
    %v238 = vadd.s32 %v237, 536870912
    %v239 = vshrl.u32 %v238, 30
    %v240 = vshll.u32 %v239, 30
    %v241 = vsub.s32 %v237, %v240
    %vm242 = vcmp.lt.s32.totalorder %v241, 0
    %v243 = vsub.s32 0, %v241
    %v244 = vsel %vm242, %v243, %v241
    %v245 = vclz %v244
    %v246 = vsub.s32 %v245, 2
    %vm247 = vcmp.gt.s32.totalorder 0, %v246
    %v248 = vsel %vm247, 0, %v246
    %v249 = vsub.s32 32, %v248
    %v250 = vshll.u32 %v241, %v248
    %v251 = vshrl.u32 %v233, %v249
    %v252 = vor.u32 %v250, %v251
    %v253 = vsub.s32 4294967266, %v248
    %v254 = vadd.s32 %v253, 127
    %v255 = vshll.u32 %v254, 23
    %v256 = vor.u32 4788187, %v255
    %v257 = vand.u32 2147483647, %v256
    %v259 = vcvt.s32.f32 %v252
    %v260 = vmul.f32 %v259, %v257
    %v261 = vxor.u32 %v260, 2147483648
    %v262 = vsel %vm179, %v261, %v260
    %v263 = vsub.s32 4, %v239
    %v264 = vsel %vm179, %v263, %v239
    %v265 = vsel %vm178, %v70, %v262
    %v266 = vsel %vm178, 0, %v264
    %v267 = vcosq.f32.pop %v265
    %v268 = vsinq.f32.pop %v265
    %vm269 = vweird.f32 %v70
    %v270 = vadd.s32 %v266, 3
    %v271 = vand.u32 %v270, 3
    %vm272 = vcmp.lt.s32.totalorder %v271, 2
    %vm273 = vcmp.eq.s32.totalorder %v271, 0
    %v274 = vxor.u32 %v268, 2147483648
    %v275 = vsel %vm273, %v267, %v274
    %vm276 = vcmp.eq.s32.totalorder %v271, 2
    %v277 = vxor.u32 %v267, 2147483648
    %v278 = vsel %vm276, %v277, %v268
    %v279 = vsel %vm272, %v275, %v278
    %v280 = vsel %vm269, nan, %v279
    %v281 = vand.u32 2147483647, %v71
    %vm282 = vcmp.le.f32.partialorder %v281, 0.7853982
    %vm283 = vcmp.lt.s32.totalorder %v71, 0
    %v284 = vand.u32 %v71, 2139095040
    %v285 = vshrl.u32 %v284, 23
    %v286 = vsub.s32 %v285, 127
    %v287 = vand.u32 2147483647, %v71
    %v288 = vand.u32 %v287, 8388607
    %v289 = vor.u32 %v288, 8388608
    %v290 = vsub.s32 0, %v289
    %v291 = vadd.s32 %v286, 1
    %vm292 = vcmp.gt.s32.totalorder %v291, 0
    %v293 = vsel %vm292, %v291, 0
    %v294 = vshrl.u32 %v293, 5
    %v295 = vand.u32 %v293, 31
    %v296 = vsub.s32 32, %v295
    %v297 = vshrl.u32 683565275, %v296
    %v298 = vshll.u32 683565275, %v295
    %v299 = vshrl.u32 2475754826, %v296
    %v300 = vor.u32 %v298, %v299
    %v301 = vshll.u32 2475754826, %v295
    %v302 = vshrl.u32 2131351028, %v296
    %v303 = vor.u32 %v301, %v302
    %v304 = vshll.u32 2131351028, %v295
    %v305 = vshrl.u32 2102212464, %v296
    %v306 = vor.u32 %v304, %v305
    %v307 = vshll.u32 2102212464, %v295
    %v308 = vshrl.u32 920167782, %v296
    %v309 = vor.u32 %v307, %v308
    %v310 = vshll.u32 920167782, %v295
    %v311 = vshrl.u32 1326507024, %v296
    %v312 = vor.u32 %v310, %v311
    %vm313 = vcmp.lt.s32.totalorder %v294, 1
    %vm314 = vcmp.lt.s32.totalorder %v294, 2
    %vm315 = vcmp.lt.s32.totalorder %v294, 3
    %vm316 = vcmp.lt.s32.totalorder %v294, 4
    %v317 = vsel %vm313, %v297, %v300
    %v318 = vsel %vm316, %v306, 2102212464
    %v319 = vsel %vm315, %v303, %v318
    %v320 = vsel %vm314, %v317, %v319
    %v321 = vsel %vm313, %v300, %v303
    %v322 = vsel %vm316, %v309, 920167782
    %v323 = vsel %vm315, %v306, %v322
    %v324 = vsel %vm314, %v321, %v323
    %v325 = vsel %vm313, %v303, %v306
    %v326 = vsel %vm316, %v312, 1326507024
    %v327 = vsel %vm315, %v309, %v326
    %v328 = vsel %vm314, %v325, %v327
    %v329 = vshll.u32 %v289, 8
    %v330 = vmul.u32.u64.compose %v329, %v328
    %v331 = vextract.low.u32 %v330
    %v332 = vextract.high.u32 %v330
    %v333 = vmul.u32.u64.compose %v329, %v324
    %v334 = vextract.low.u32 %v333
    %v335 = vextract.high.u32 %v333
    %v336 = vmul.u32 %v329, %v320
    %v337 = vadd.s32 %v332, %v334
    %vm338 = vc.u32 %v332, %v334
    %v339 = vadd.s32 %v335, 1
    %v340 = vsel %vm338, %v339, %v335
    %v341 = vadd.s32 %v336, %v340
    %v342 = vadd.s32 %v341, 536870912
    %v343 = vshrl.u32 %v342, 30
    %v344 = vshll.u32 %v343, 30
    %v345 = vsub.s32 %v341, %v344
    %vm346 = vcmp.lt.s32.totalorder %v345, 0
    %v347 = vsub.s32 0, %v345
    %v348 = vsel %vm346, %v347, %v345
    %v349 = vclz %v348
    %v350 = vsub.s32 %v349, 2
    %vm351 = vcmp.gt.s32.totalorder 0, %v350
    %v352 = vsel %vm351, 0, %v350
    %v353 = vsub.s32 32, %v352
    %v354 = vshll.u32 %v345, %v352
    %v355 = vshrl.u32 %v337, %v353
    %v356 = vor.u32 %v354, %v355
    %v357 = vsub.s32 4294967266, %v352
    %v358 = vadd.s32 %v357, 127
    %v359 = vshll.u32 %v358, 23
    %v360 = vor.u32 4788187, %v359
    %v361 = vand.u32 2147483647, %v360
    %v363 = vcvt.s32.f32 %v356
    %v364 = vmul.f32 %v363, %v361
    %v365 = vxor.u32 %v364, 2147483648
    %v366 = vsel %vm283, %v365, %v364
    %v367 = vsub.s32 4, %v343
    %v368 = vsel %vm283, %v367, %v343
    %v369 = vsel %vm282, %v71, %v366
    %v370 = vsel %vm282, 0, %v368
    %v371 = vcosq.f32.pop %v369
    %v372 = vsinq.f32.pop %v369
    %vm373 = vweird.f32 %v71
    %v374 = vadd.s32 %v370, 3
    %v375 = vand.u32 %v374, 3
    %vm376 = vcmp.lt.s32.totalorder %v375, 2
    %vm377 = vcmp.eq.s32.totalorder %v375, 0
    %v378 = vxor.u32 %v372, 2147483648
    %v379 = vsel %vm377, %v371, %v378
    %vm380 = vcmp.eq.s32.totalorder %v375, 2
    %v381 = vxor.u32 %v371, 2147483648
    %v382 = vsel %vm380, %v381, %v372
    %v383 = vsel %vm376, %v379, %v382
    %v384 = vsel %vm373, nan, %v383
    %v385 = vand.u32 2147483647, %v72
    %vm386 = vcmp.le.f32.partialorder %v385, 0.7853982
    %vm387 = vcmp.lt.s32.totalorder %v72, 0
    %v388 = vand.u32 %v72, 2139095040
    %v389 = vshrl.u32 %v388, 23
    %v390 = vsub.s32 %v389, 127
    %v391 = vand.u32 2147483647, %v72
    %v392 = vand.u32 %v391, 8388607
    %v393 = vor.u32 %v392, 8388608
    %v394 = vsub.s32 0, %v393
    %v395 = vadd.s32 %v390, 1
    %vm396 = vcmp.gt.s32.totalorder %v395, 0
    %v397 = vsel %vm396, %v395, 0
    %v398 = vshrl.u32 %v397, 5
    %v399 = vand.u32 %v397, 31
    %v400 = vsub.s32 32, %v399
    %v401 = vshrl.u32 683565275, %v400
    %v402 = vshll.u32 683565275, %v399
    %v403 = vshrl.u32 2475754826, %v400
    %v404 = vor.u32 %v402, %v403
    %v405 = vshll.u32 2475754826, %v399
    %v406 = vshrl.u32 2131351028, %v400
    %v407 = vor.u32 %v405, %v406
    %v408 = vshll.u32 2131351028, %v399
    %v409 = vshrl.u32 2102212464, %v400
    %v410 = vor.u32 %v408, %v409
    %v411 = vshll.u32 2102212464, %v399
    %v412 = vshrl.u32 920167782, %v400
    %v413 = vor.u32 %v411, %v412
    %v414 = vshll.u32 920167782, %v399
    %v415 = vshrl.u32 1326507024, %v400
    %v416 = vor.u32 %v414, %v415
    %vm417 = vcmp.lt.s32.totalorder %v398, 1
    %vm418 = vcmp.lt.s32.totalorder %v398, 2
    %vm419 = vcmp.lt.s32.totalorder %v398, 3
    %vm420 = vcmp.lt.s32.totalorder %v398, 4
    %v421 = vsel %vm417, %v401, %v404
    %v422 = vsel %vm420, %v410, 2102212464
    %v423 = vsel %vm419, %v407, %v422
    %v424 = vsel %vm418, %v421, %v423
    %v425 = vsel %vm417, %v404, %v407
    %v426 = vsel %vm420, %v413, 920167782
    %v427 = vsel %vm419, %v410, %v426
    %v428 = vsel %vm418, %v425, %v427
    %v429 = vsel %vm417, %v407, %v410
    %v430 = vsel %vm420, %v416, 1326507024
    %v431 = vsel %vm419, %v413, %v430
    %v432 = vsel %vm418, %v429, %v431
    %v433 = vshll.u32 %v393, 8
    %v434 = vmul.u32.u64.compose %v433, %v432
    %v435 = vextract.low.u32 %v434
    %v436 = vextract.high.u32 %v434
    %v437 = vmul.u32.u64.compose %v433, %v428
    %v438 = vextract.low.u32 %v437
    %v439 = vextract.high.u32 %v437
    %v440 = vmul.u32 %v433, %v424
    %v441 = vadd.s32 %v436, %v438
    %vm442 = vc.u32 %v436, %v438
    %v443 = vadd.s32 %v439, 1
    %v444 = vsel %vm442, %v443, %v439
    %v445 = vadd.s32 %v440, %v444
    %v446 = vadd.s32 %v445, 536870912
    %v447 = vshrl.u32 %v446, 30
    %v448 = vshll.u32 %v447, 30
    %v449 = vsub.s32 %v445, %v448
    %vm450 = vcmp.lt.s32.totalorder %v449, 0
    %v451 = vsub.s32 0, %v449
    %v452 = vsel %vm450, %v451, %v449
    %v453 = vclz %v452
    %v454 = vsub.s32 %v453, 2
    %vm455 = vcmp.gt.s32.totalorder 0, %v454
    %v456 = vsel %vm455, 0, %v454
    %v457 = vsub.s32 32, %v456
    %v458 = vshll.u32 %v449, %v456
    %v459 = vshrl.u32 %v441, %v457
    %v460 = vor.u32 %v458, %v459
    %v461 = vsub.s32 4294967266, %v456
    %v462 = vadd.s32 %v461, 127
    %v463 = vshll.u32 %v462, 23
    %v464 = vor.u32 4788187, %v463
    %v465 = vand.u32 2147483647, %v464
    %v467 = vcvt.s32.f32 %v460
    %v468 = vmul.f32 %v467, %v465
    %v469 = vxor.u32 %v468, 2147483648
    %v470 = vsel %vm387, %v469, %v468
    %v471 = vsub.s32 4, %v447
    %v472 = vsel %vm387, %v471, %v447
    %v473 = vsel %vm386, %v72, %v470
    %v474 = vsel %vm386, 0, %v472
    %v475 = vcosq.f32.pop %v473
    %v476 = vsinq.f32.pop %v473
    %vm477 = vweird.f32 %v72
    %v478 = vadd.s32 %v474, 3
    %v479 = vand.u32 %v478, 3
    %vm480 = vcmp.lt.s32.totalorder %v479, 2
    %vm481 = vcmp.eq.s32.totalorder %v479, 0
    %v482 = vxor.u32 %v476, 2147483648
    %v483 = vsel %vm481, %v475, %v482
    %vm484 = vcmp.eq.s32.totalorder %v479, 2
    %v485 = vxor.u32 %v475, 2147483648
    %v486 = vsel %vm484, %v485, %v476
    %v487 = vsel %vm480, %v483, %v486
    %v488 = vsel %vm477, nan, %v487
    %v489 = vld [vmem:[%s2] sm:$0xff]
    %v490 = vld [vmem:[%s2 + $0x8] sm:$0xff]
    %v491 = vand.u32 2147483647, %v69
    %vm492 = vcmp.le.f32.partialorder %v491, 0.7853982
    %vm493 = vcmp.lt.s32.totalorder %v69, 0
    %v494 = vand.u32 %v69, 2139095040
    %v495 = vshrl.u32 %v494, 23
    %v496 = vsub.s32 %v495, 127
    %v497 = vand.u32 2147483647, %v69
    %v498 = vand.u32 %v497, 8388607
    %v499 = vor.u32 %v498, 8388608
    %v500 = vsub.s32 0, %v499
    %v501 = vadd.s32 %v496, 1
    %vm502 = vcmp.gt.s32.totalorder %v501, 0
    %v503 = vsel %vm502, %v501, 0
    %v504 = vshrl.u32 %v503, 5
    %v505 = vand.u32 %v503, 31
    %v506 = vsub.s32 32, %v505
    %v507 = vshrl.u32 683565275, %v506
    %v508 = vshll.u32 683565275, %v505
    %v509 = vshrl.u32 2475754826, %v506
    %v510 = vor.u32 %v508, %v509
    %v511 = vshll.u32 2475754826, %v505
    %v512 = vshrl.u32 2131351028, %v506
    %v513 = vor.u32 %v511, %v512
    %v514 = vshll.u32 2131351028, %v505
    %v515 = vshrl.u32 2102212464, %v506
    %v516 = vor.u32 %v514, %v515
    %v517 = vshll.u32 2102212464, %v505
    %v518 = vshrl.u32 920167782, %v506
    %v519 = vor.u32 %v517, %v518
    %v520 = vshll.u32 920167782, %v505
    %v521 = vshrl.u32 1326507024, %v506
    %v522 = vor.u32 %v520, %v521
    %vm523 = vcmp.lt.s32.totalorder %v504, 1
    %vm524 = vcmp.lt.s32.totalorder %v504, 2
    %vm525 = vcmp.lt.s32.totalorder %v504, 3
    %vm526 = vcmp.lt.s32.totalorder %v504, 4
    %v527 = vsel %vm523, %v507, %v510
    %v528 = vsel %vm526, %v516, 2102212464
    %v529 = vsel %vm525, %v513, %v528
    %v530 = vsel %vm524, %v527, %v529
    %v531 = vsel %vm523, %v510, %v513
    %v532 = vsel %vm526, %v519, 920167782
    %v533 = vsel %vm525, %v516, %v532
    %v534 = vsel %vm524, %v531, %v533
    %v535 = vsel %vm523, %v513, %v516
    %v536 = vsel %vm526, %v522, 1326507024
    %v537 = vsel %vm525, %v519, %v536
    %v538 = vsel %vm524, %v535, %v537
    %v539 = vshll.u32 %v499, 8
    %v540 = vmul.u32.u64.compose %v539, %v538
    %v541 = vextract.low.u32 %v540
    %v542 = vextract.high.u32 %v540
    %v543 = vmul.u32.u64.compose %v539, %v534
    %v544 = vextract.low.u32 %v543
    %v545 = vextract.high.u32 %v543
    %v546 = vmul.u32 %v539, %v530
    %v547 = vadd.s32 %v542, %v544
    %vm548 = vc.u32 %v542, %v544
    %v549 = vadd.s32 %v545, 1
    %v550 = vsel %vm548, %v549, %v545
    %v551 = vadd.s32 %v546, %v550
    %v552 = vadd.s32 %v551, 536870912
    %v553 = vshrl.u32 %v552, 30
    %v554 = vshll.u32 %v553, 30
    %v555 = vsub.s32 %v551, %v554
    %vm556 = vcmp.lt.s32.totalorder %v555, 0
    %v557 = vsub.s32 0, %v555
    %v558 = vsel %vm556, %v557, %v555
    %v559 = vclz %v558
    %v560 = vsub.s32 %v559, 2
    %vm561 = vcmp.gt.s32.totalorder 0, %v560
    %v562 = vsel %vm561, 0, %v560
    %v563 = vsub.s32 32, %v562
    %v564 = vshll.u32 %v555, %v562
    %v565 = vshrl.u32 %v547, %v563
    %v566 = vor.u32 %v564, %v565
    %v567 = vsub.s32 4294967266, %v562
    %v568 = vadd.s32 %v567, 127
    %v569 = vshll.u32 %v568, 23
    %v570 = vor.u32 4788187, %v569
    %v571 = vand.u32 2147483647, %v570
    %v573 = vcvt.s32.f32 %v566
    %v574 = vmul.f32 %v573, %v571
    %v575 = vxor.u32 %v574, 2147483648
    %v576 = vsel %vm493, %v575, %v574
    %v577 = vsub.s32 4, %v553
    %v578 = vsel %vm493, %v577, %v553
    %v579 = vsel %vm492, %v69, %v576
    %v580 = vsel %vm492, 0, %v578
    %v581 = vcosq.f32.pop %v579
    %v582 = vsinq.f32.pop %v579
    %vm583 = vweird.f32 %v69
    %v584 = vand.u32 %v580, 3
    %vm585 = vcmp.lt.s32.totalorder %v584, 2
    %vm586 = vcmp.eq.s32.totalorder %v584, 0
    %v587 = vxor.u32 %v582, 2147483648
    %v588 = vsel %vm586, %v581, %v587
    %vm589 = vcmp.eq.s32.totalorder %v584, 2
    %v590 = vxor.u32 %v581, 2147483648
    %v591 = vsel %vm589, %v590, %v582
    %v592 = vsel %vm585, %v588, %v591
    %v593 = vsel %vm583, nan, %v592
    %v594 = vand.u32 2147483647, %v70
    %vm595 = vcmp.le.f32.partialorder %v594, 0.7853982
    %vm596 = vcmp.lt.s32.totalorder %v70, 0
    %v597 = vand.u32 %v70, 2139095040
    %v598 = vshrl.u32 %v597, 23
    %v599 = vsub.s32 %v598, 127
    %v600 = vand.u32 2147483647, %v70
    %v601 = vand.u32 %v600, 8388607
    %v602 = vor.u32 %v601, 8388608
    %v603 = vsub.s32 0, %v602
    %v604 = vadd.s32 %v599, 1
    %vm605 = vcmp.gt.s32.totalorder %v604, 0
    %v606 = vsel %vm605, %v604, 0
    %v607 = vshrl.u32 %v606, 5
    %v608 = vand.u32 %v606, 31
    %v609 = vsub.s32 32, %v608
    %v610 = vshrl.u32 683565275, %v609
    %v611 = vshll.u32 683565275, %v608
    %v612 = vshrl.u32 2475754826, %v609
    %v613 = vor.u32 %v611, %v612
    %v614 = vshll.u32 2475754826, %v608
    %v615 = vshrl.u32 2131351028, %v609
    %v616 = vor.u32 %v614, %v615
    %v617 = vshll.u32 2131351028, %v608
    %v618 = vshrl.u32 2102212464, %v609
    %v619 = vor.u32 %v617, %v618
    %v620 = vshll.u32 2102212464, %v608
    %v621 = vshrl.u32 920167782, %v609
    %v622 = vor.u32 %v620, %v621
    %v623 = vshll.u32 920167782, %v608
    %v624 = vshrl.u32 1326507024, %v609
    %v625 = vor.u32 %v623, %v624
    %vm626 = vcmp.lt.s32.totalorder %v607, 1
    %vm627 = vcmp.lt.s32.totalorder %v607, 2
    %vm628 = vcmp.lt.s32.totalorder %v607, 3
    %vm629 = vcmp.lt.s32.totalorder %v607, 4
    %v630 = vsel %vm626, %v610, %v613
    %v631 = vsel %vm629, %v619, 2102212464
    %v632 = vsel %vm628, %v616, %v631
    %v633 = vsel %vm627, %v630, %v632
    %v634 = vsel %vm626, %v613, %v616
    %v635 = vsel %vm629, %v622, 920167782
    %v636 = vsel %vm628, %v619, %v635
    %v637 = vsel %vm627, %v634, %v636
    %v638 = vsel %vm626, %v616, %v619
    %v639 = vsel %vm629, %v625, 1326507024
    %v640 = vsel %vm628, %v622, %v639
    %v641 = vsel %vm627, %v638, %v640
    %v642 = vshll.u32 %v602, 8
    %v643 = vmul.u32.u64.compose %v642, %v641
    %v644 = vextract.low.u32 %v643
    %v645 = vextract.high.u32 %v643
    %v646 = vmul.u32.u64.compose %v642, %v637
    %v647 = vextract.low.u32 %v646
    %v648 = vextract.high.u32 %v646
    %v649 = vmul.u32 %v642, %v633
    %v650 = vadd.s32 %v645, %v647
    %vm651 = vc.u32 %v645, %v647
    %v652 = vadd.s32 %v648, 1
    %v653 = vsel %vm651, %v652, %v648
    %v654 = vadd.s32 %v649, %v653
    %v655 = vadd.s32 %v654, 536870912
    %v656 = vshrl.u32 %v655, 30
    %v657 = vshll.u32 %v656, 30
    %v658 = vsub.s32 %v654, %v657
    %vm659 = vcmp.lt.s32.totalorder %v658, 0
    %v660 = vsub.s32 0, %v658
    %v661 = vsel %vm659, %v660, %v658
    %v662 = vclz %v661
    %v663 = vsub.s32 %v662, 2
    %vm664 = vcmp.gt.s32.totalorder 0, %v663
    %v665 = vsel %vm664, 0, %v663
    %v666 = vsub.s32 32, %v665
    %v667 = vshll.u32 %v658, %v665
    %v668 = vshrl.u32 %v650, %v666
    %v669 = vor.u32 %v667, %v668
    %v670 = vsub.s32 4294967266, %v665
    %v671 = vadd.s32 %v670, 127
    %v672 = vshll.u32 %v671, 23
    %v673 = vor.u32 4788187, %v672
    %v674 = vand.u32 2147483647, %v673
    %v676 = vcvt.s32.f32 %v669
    %v677 = vmul.f32 %v676, %v674
    %v678 = vxor.u32 %v677, 2147483648
    %v679 = vsel %vm596, %v678, %v677
    %v680 = vsub.s32 4, %v656
    %v681 = vsel %vm596, %v680, %v656
    %v682 = vsel %vm595, %v70, %v679
    %v683 = vsel %vm595, 0, %v681
    %v684 = vcosq.f32.pop %v682
    %v685 = vsinq.f32.pop %v682
    %vm686 = vweird.f32 %v70
    %v687 = vand.u32 %v683, 3
    %vm688 = vcmp.lt.s32.totalorder %v687, 2
    %vm689 = vcmp.eq.s32.totalorder %v687, 0
    %v690 = vxor.u32 %v685, 2147483648
    %v691 = vsel %vm689, %v684, %v690
    %vm692 = vcmp.eq.s32.totalorder %v687, 2
    %v693 = vxor.u32 %v684, 2147483648
    %v694 = vsel %vm692, %v693, %v685
    %v695 = vsel %vm688, %v691, %v694
    %v696 = vsel %vm686, nan, %v695
    %v697 = vand.u32 2147483647, %v71
    %vm698 = vcmp.le.f32.partialorder %v697, 0.7853982
    %vm699 = vcmp.lt.s32.totalorder %v71, 0
    %v700 = vand.u32 %v71, 2139095040
    %v701 = vshrl.u32 %v700, 23
    %v702 = vsub.s32 %v701, 127
    %v703 = vand.u32 2147483647, %v71
    %v704 = vand.u32 %v703, 8388607
    %v705 = vor.u32 %v704, 8388608
    %v706 = vsub.s32 0, %v705
    %v707 = vadd.s32 %v702, 1
    %vm708 = vcmp.gt.s32.totalorder %v707, 0
    %v709 = vsel %vm708, %v707, 0
    %v710 = vshrl.u32 %v709, 5
    %v711 = vand.u32 %v709, 31
    %v712 = vsub.s32 32, %v711
    %v713 = vshrl.u32 683565275, %v712
    %v714 = vshll.u32 683565275, %v711
    %v715 = vshrl.u32 2475754826, %v712
    %v716 = vor.u32 %v714, %v715
    %v717 = vshll.u32 2475754826, %v711
    %v718 = vshrl.u32 2131351028, %v712
    %v719 = vor.u32 %v717, %v718
    %v720 = vshll.u32 2131351028, %v711
    %v721 = vshrl.u32 2102212464, %v712
    %v722 = vor.u32 %v720, %v721
    %v723 = vshll.u32 2102212464, %v711
    %v724 = vshrl.u32 920167782, %v712
    %v725 = vor.u32 %v723, %v724
    %v726 = vshll.u32 920167782, %v711
    %v727 = vshrl.u32 1326507024, %v712
    %v728 = vor.u32 %v726, %v727
    %vm729 = vcmp.lt.s32.totalorder %v710, 1
    %vm730 = vcmp.lt.s32.totalorder %v710, 2
    %vm731 = vcmp.lt.s32.totalorder %v710, 3
    %vm732 = vcmp.lt.s32.totalorder %v710, 4
    %v733 = vsel %vm729, %v713, %v716
    %v734 = vsel %vm732, %v722, 2102212464
    %v735 = vsel %vm731, %v719, %v734
    %v736 = vsel %vm730, %v733, %v735
    %v737 = vsel %vm729, %v716, %v719
    %v738 = vsel %vm732, %v725, 920167782
    %v739 = vsel %vm731, %v722, %v738
    %v740 = vsel %vm730, %v737, %v739
    %v741 = vsel %vm729, %v719, %v722
    %v742 = vsel %vm732, %v728, 1326507024
    %v743 = vsel %vm731, %v725, %v742
    %v744 = vsel %vm730, %v741, %v743
    %v745 = vshll.u32 %v705, 8
    %v746 = vmul.u32.u64.compose %v745, %v744
    %v747 = vextract.low.u32 %v746
    %v748 = vextract.high.u32 %v746
    %v749 = vmul.u32.u64.compose %v745, %v740
    %v750 = vextract.low.u32 %v749
    %v751 = vextract.high.u32 %v749
    %v752 = vmul.u32 %v745, %v736
    %v753 = vadd.s32 %v748, %v750
    %vm754 = vc.u32 %v748, %v750
    %v755 = vadd.s32 %v751, 1
    %v756 = vsel %vm754, %v755, %v751
    %v757 = vadd.s32 %v752, %v756
    %v758 = vadd.s32 %v757, 536870912
    %v759 = vshrl.u32 %v758, 30
    %v760 = vshll.u32 %v759, 30
    %v761 = vsub.s32 %v757, %v760
    %vm762 = vcmp.lt.s32.totalorder %v761, 0
    %v763 = vsub.s32 0, %v761
    %v764 = vsel %vm762, %v763, %v761
    %v765 = vclz %v764
    %v766 = vsub.s32 %v765, 2
    %vm767 = vcmp.gt.s32.totalorder 0, %v766
    %v768 = vsel %vm767, 0, %v766
    %v769 = vsub.s32 32, %v768
    %v770 = vshll.u32 %v761, %v768
    %v771 = vshrl.u32 %v753, %v769
    %v772 = vor.u32 %v770, %v771
    %v773 = vsub.s32 4294967266, %v768
    %v774 = vadd.s32 %v773, 127
    %v775 = vshll.u32 %v774, 23
    %v776 = vor.u32 4788187, %v775
    %v777 = vand.u32 2147483647, %v776
    %v779 = vcvt.s32.f32 %v772
    %v780 = vmul.f32 %v779, %v777
    %v781 = vxor.u32 %v780, 2147483648
    %v782 = vsel %vm699, %v781, %v780
    %v783 = vsub.s32 4, %v759
    %v784 = vsel %vm699, %v783, %v759
    %v785 = vsel %vm698, %v71, %v782
    %v786 = vsel %vm698, 0, %v784
    %v787 = vcosq.f32.pop %v785
    %v788 = vsinq.f32.pop %v785
    %vm789 = vweird.f32 %v71
    %v790 = vand.u32 %v786, 3
    %vm791 = vcmp.lt.s32.totalorder %v790, 2
    %vm792 = vcmp.eq.s32.totalorder %v790, 0
    %v793 = vxor.u32 %v788, 2147483648
    %v794 = vsel %vm792, %v787, %v793
    %vm795 = vcmp.eq.s32.totalorder %v790, 2
    %v796 = vxor.u32 %v787, 2147483648
    %v797 = vsel %vm795, %v796, %v788
    %v798 = vsel %vm791, %v794, %v797
    %v799 = vsel %vm789, nan, %v798
    %v800 = vand.u32 2147483647, %v72
    %vm801 = vcmp.le.f32.partialorder %v800, 0.7853982
    %vm802 = vcmp.lt.s32.totalorder %v72, 0
    %v803 = vand.u32 %v72, 2139095040
    %v804 = vshrl.u32 %v803, 23
    %v805 = vsub.s32 %v804, 127
    %v806 = vand.u32 2147483647, %v72
    %v807 = vand.u32 %v806, 8388607
    %v808 = vor.u32 %v807, 8388608
    %v809 = vsub.s32 0, %v808
    %v810 = vadd.s32 %v805, 1
    %vm811 = vcmp.gt.s32.totalorder %v810, 0
    %v812 = vsel %vm811, %v810, 0
    %v813 = vshrl.u32 %v812, 5
    %v814 = vand.u32 %v812, 31
    %v815 = vsub.s32 32, %v814
    %v816 = vshrl.u32 683565275, %v815
    %v817 = vshll.u32 683565275, %v814
    %v818 = vshrl.u32 2475754826, %v815
    %v819 = vor.u32 %v817, %v818
    %v820 = vshll.u32 2475754826, %v814
    %v821 = vshrl.u32 2131351028, %v815
    %v822 = vor.u32 %v820, %v821
    %v823 = vshll.u32 2131351028, %v814
    %v824 = vshrl.u32 2102212464, %v815
    %v825 = vor.u32 %v823, %v824
    %v826 = vshll.u32 2102212464, %v814
    %v827 = vshrl.u32 920167782, %v815
    %v828 = vor.u32 %v826, %v827
    %v829 = vshll.u32 920167782, %v814
    %v830 = vshrl.u32 1326507024, %v815
    %v831 = vor.u32 %v829, %v830
    %vm832 = vcmp.lt.s32.totalorder %v813, 1
    %vm833 = vcmp.lt.s32.totalorder %v813, 2
    %vm834 = vcmp.lt.s32.totalorder %v813, 3
    %vm835 = vcmp.lt.s32.totalorder %v813, 4
    %v836 = vsel %vm832, %v816, %v819
    %v837 = vsel %vm835, %v825, 2102212464
    %v838 = vsel %vm834, %v822, %v837
    %v839 = vsel %vm833, %v836, %v838
    %v840 = vsel %vm832, %v819, %v822
    %v841 = vsel %vm835, %v828, 920167782
    %v842 = vsel %vm834, %v825, %v841
    %v843 = vsel %vm833, %v840, %v842
    %v844 = vsel %vm832, %v822, %v825
    %v845 = vsel %vm835, %v831, 1326507024
    %v846 = vsel %vm834, %v828, %v845
    %v847 = vsel %vm833, %v844, %v846
    %v848 = vshll.u32 %v808, 8
    %v849 = vmul.u32.u64.compose %v848, %v847
    %v850 = vextract.low.u32 %v849
    %v851 = vextract.high.u32 %v849
    %v852 = vmul.u32.u64.compose %v848, %v843
    %v853 = vextract.low.u32 %v852
    %v854 = vextract.high.u32 %v852
    %v855 = vmul.u32 %v848, %v839
    %v856 = vadd.s32 %v851, %v853
    %vm857 = vc.u32 %v851, %v853
    %v858 = vadd.s32 %v854, 1
    %v859 = vsel %vm857, %v858, %v854
    %v860 = vadd.s32 %v855, %v859
    %v861 = vadd.s32 %v860, 536870912
    %v862 = vshrl.u32 %v861, 30
    %v863 = vshll.u32 %v862, 30
    %v864 = vsub.s32 %v860, %v863
    %vm865 = vcmp.lt.s32.totalorder %v864, 0
    %v866 = vsub.s32 0, %v864
    %v867 = vsel %vm865, %v866, %v864
    %v868 = vclz %v867
    %v869 = vsub.s32 %v868, 2
    %vm870 = vcmp.gt.s32.totalorder 0, %v869
    %v871 = vsel %vm870, 0, %v869
    %v872 = vsub.s32 32, %v871
    %v873 = vshll.u32 %v864, %v871
    %v874 = vshrl.u32 %v856, %v872
    %v875 = vor.u32 %v873, %v874
    %v876 = vsub.s32 4294967266, %v871
    %v877 = vadd.s32 %v876, 127
    %v878 = vshll.u32 %v877, 23
    %v879 = vor.u32 4788187, %v878
    %v880 = vand.u32 2147483647, %v879
    %v882 = vcvt.s32.f32 %v875
    %v883 = vmul.f32 %v882, %v880
    %v884 = vxor.u32 %v883, 2147483648
    %v885 = vsel %vm802, %v884, %v883
    %v886 = vsub.s32 4, %v862
    %v887 = vsel %vm802, %v886, %v862
    %v888 = vsel %vm801, %v72, %v885
    %v889 = vsel %vm801, 0, %v887
    %v890 = vcosq.f32.pop %v888
    %v891 = vsinq.f32.pop %v888
    %vm892 = vweird.f32 %v72
    %v893 = vand.u32 %v889, 3
    %vm894 = vcmp.lt.s32.totalorder %v893, 2
    %vm895 = vcmp.eq.s32.totalorder %v893, 0
    %v896 = vxor.u32 %v891, 2147483648
    %v897 = vsel %vm895, %v890, %v896
    %vm898 = vcmp.eq.s32.totalorder %v893, 2
    %v899 = vxor.u32 %v890, 2147483648
    %v900 = vsel %vm898, %v899, %v891
    %v901 = vsel %vm894, %v897, %v900
    %v902 = vsel %vm892, nan, %v901
    %v903 = vld [vmem:[#allocation2] sm:$0xff]
    %v904 = vld [vmem:[#allocation2 + $0x8] sm:$0xff]
    %vm905 = vcmask 130048
    %v907 = vsel %vm905, %v593, 0
    %v910 = vsel %vm905, %v696, 0
    %v913 = vsel %vm905, %v799, 0
    %v916 = vsel %vm905, %v902, 0
    %918 = vmatprep.subr.mxu0 0.0
    %919 = vmatpush1.msra.mxu0 %v903
    %920 = vmatprep.subr.mxu0 0.0
    %921 = vmatpush1.msra.mxu0 %v904
    %922 = vmatprep.subr.mxu0 0.0
    %923 = vmatpush1.msra.mxu0 0.0
    %924 = vmatprep.subr.mxu0 0.0
    %925 = vmatpush1.msra.mxu0 0.0
    %926 = vmatprep.subr.mxu0 0.0
    %927 = vmatpush1.msra.mxu0 0.0
    %928 = vmatprep.subr.mxu0 0.0
    %929 = vmatpush1.msra.mxu0 0.0
    %930 = vmatprep.subr.mxu0 0.0
    %931 = vmatpush1.msra.mxu0 0.0
    %932 = vmatprep.subr.mxu0 0.0
    %933 = vmatpush1.msra.mxu0 0.0
    %934 = vmatprep.subr.mxu0 0.0
    %935 = vmatpush1.msra.mxu0 0.0
    %936 = vmatprep.subr.mxu0 0.0
    %937 = vmatpush1.msra.mxu0 0.0
    %938 = vmatprep.subr.mxu0 0.0
    %939 = vmatpush1.msra.mxu0 0.0
    %940 = vmatprep.subr.mxu0 0.0
    %941 = vmatpush1.msra.mxu0 0.0
    %942 = vmatprep.subr.mxu0 0.0
    %943 = vmatpush1.msra.mxu0 0.0
    %944 = vmatprep.subr.mxu0 0.0
    %945 = vmatpush1.msra.mxu0 0.0
    %946 = vmatprep.subr.mxu0 0.0
    %947 = vmatpush1.msra.mxu0 0.0
    %948 = vmatprep.subr.mxu0 0.0
    %949 = vmatpush1.msra.mxu0 0.0
    %950 = vmatprep.subr.mxu0 0.0
    %951 = vmatpush1.msra.mxu0 0.0
    %952 = vmatprep.subr.mxu0 0.0
    %953 = vmatpush1.msra.mxu0 0.0
    %954 = vmatprep.subr.mxu0 0.0
    %955 = vmatpush1.msra.mxu0 0.0
    %956 = vmatprep.subr.mxu0 0.0
    %957 = vmatpush1.msra.mxu0 0.0
    %958 = vmatprep.subr.mxu0 0.0
    %959 = vmatpush1.msra.mxu0 0.0
    %960 = vmatprep.subr.mxu0 0.0
    %961 = vmatpush1.msra.mxu0 0.0
    %962 = vmatprep.subr.mxu0 0.0
    %963 = vmatpush1.msra.mxu0 0.0
    %964 = vmatprep.subr.mxu0 0.0
    %965 = vmatpush1.msra.mxu0 0.0
    %966 = vmatprep.subr.mxu0 0.0
    %967 = vmatpush1.msra.mxu0 0.0
    %968 = vmatprep.subr.mxu0 0.0
    %969 = vmatpush1.msra.mxu0 0.0
    %970 = vmatprep.subr.mxu0 0.0
    %971 = vmatpush1.msra.mxu0 0.0
    %972 = vmatprep.subr.mxu0 0.0
    %973 = vmatpush1.msra.mxu0 0.0
    %974 = vmatprep.subr.mxu0 0.0
    %975 = vmatpush1.msra.mxu0 0.0
    %976 = vmatprep.subr.mxu0 0.0
    %977 = vmatpush1.msra.mxu0 0.0
    %978 = vmatprep.subr.mxu0 0.0
    %979 = vmatpush1.msra.mxu0 0.0
    %980 = vmatprep.subr.mxu0 0.0
    %981 = vmatpush1.msra.mxu0 0.0
    %982 = vmatprep.mubr.f32.mxu0 0.0
    %983 = vmatmul.mubr.f32.gmra.mrb[0].mxu0 %v907
    %v984 = vpop.f32.mrb[0].mxu0
    %v985 = vadd.f32 0.0, %v984
    %v986 = vpop.f32.mrb[0].mxu0
    %987 = vmatprep.mubr.f32.mxu0 0.0
    %988 = vmatmul.mubr.f32.gmra.mrb[0].mxu0 %v910
    %v989 = vpop.f32.mrb[0].mxu0
    %v990 = vadd.f32 0.0, %v989
    %v991 = vpop.f32.mrb[0].mxu0
    %992 = vmatprep.mubr.f32.mxu0 0.0
    %993 = vmatmul.mubr.f32.gmra.mrb[0].mxu0 %v913
    %v994 = vpop.f32.mrb[0].mxu0
    %v995 = vadd.f32 0.0, %v994
    %v996 = vpop.f32.mrb[0].mxu0
    %997 = vmatprep.mubr.f32.mxu0 0.0
    %998 = vmatmul.mubr.f32.gmra.mrb[0].mxu0 %v916
    %v999 = vpop.f32.mrb[0].mxu0
    %v1000 = vadd.f32 0.0, %v999
    %v1001 = vpop.f32.mrb[0].mxu0
    %1002 = vdwg.mxu0
    %v1004 = vsel %vm905, %v176, 0
    %v1007 = vsel %vm905, %v280, 0
    %v1010 = vsel %vm905, %v384, 0
    %v1013 = vsel %vm905, %v488, 0
    %1015 = vmatprep.subr.mxu0 0.0
    %1016 = vmatpush1.msra.mxu0 %v489
    %1017 = vmatprep.subr.mxu0 0.0
    %1018 = vmatpush1.msra.mxu0 %v490
    %1019 = vmatprep.subr.mxu0 0.0
    %1020 = vmatpush1.msra.mxu0 0.0
    %1021 = vmatprep.subr.mxu0 0.0
    %1022 = vmatpush1.msra.mxu0 0.0
    %1023 = vmatprep.subr.mxu0 0.0
    %1024 = vmatpush1.msra.mxu0 0.0
    %1025 = vmatprep.subr.mxu0 0.0
    %1026 = vmatpush1.msra.mxu0 0.0
    %1027 = vmatprep.subr.mxu0 0.0
    %1028 = vmatpush1.msra.mxu0 0.0
    %1029 = vmatprep.subr.mxu0 0.0
    %1030 = vmatpush1.msra.mxu0 0.0
    %1031 = vmatprep.subr.mxu0 0.0
    %1032 = vmatpush1.msra.mxu0 0.0
    %1033 = vmatprep.subr.mxu0 0.0
    %1034 = vmatpush1.msra.mxu0 0.0
    %1035 = vmatprep.subr.mxu0 0.0
    %1036 = vmatpush1.msra.mxu0 0.0
    %1037 = vmatprep.subr.mxu0 0.0
    %1038 = vmatpush1.msra.mxu0 0.0
    %1039 = vmatprep.subr.mxu0 0.0
    %1040 = vmatpush1.msra.mxu0 0.0
    %1041 = vmatprep.subr.mxu0 0.0
    %1042 = vmatpush1.msra.mxu0 0.0
    %1043 = vmatprep.subr.mxu0 0.0
    %1044 = vmatpush1.msra.mxu0 0.0
    %1045 = vmatprep.subr.mxu0 0.0
    %1046 = vmatpush1.msra.mxu0 0.0
    %1047 = vmatprep.subr.mxu0 0.0
    %1048 = vmatpush1.msra.mxu0 0.0
    %1049 = vmatprep.subr.mxu0 0.0
    %1050 = vmatpush1.msra.mxu0 0.0
    %1051 = vmatprep.subr.mxu0 0.0
    %1052 = vmatpush1.msra.mxu0 0.0
    %1053 = vmatprep.subr.mxu0 0.0
    %1054 = vmatpush1.msra.mxu0 0.0
    %1055 = vmatprep.subr.mxu0 0.0
    %1056 = vmatpush1.msra.mxu0 0.0
    %1057 = vmatprep.subr.mxu0 0.0
    %1058 = vmatpush1.msra.mxu0 0.0
    %1059 = vmatprep.subr.mxu0 0.0
    %1060 = vmatpush1.msra.mxu0 0.0
    %1061 = vmatprep.subr.mxu0 0.0
    %1062 = vmatpush1.msra.mxu0 0.0
    %1063 = vmatprep.subr.mxu0 0.0
    %1064 = vmatpush1.msra.mxu0 0.0
    %1065 = vmatprep.subr.mxu0 0.0
    %1066 = vmatpush1.msra.mxu0 0.0
    %1067 = vmatprep.subr.mxu0 0.0
    %1068 = vmatpush1.msra.mxu0 0.0
    %1069 = vmatprep.subr.mxu0 0.0
    %1070 = vmatpush1.msra.mxu0 0.0
    %1071 = vmatprep.subr.mxu0 0.0
    %1072 = vmatpush1.msra.mxu0 0.0
    %1073 = vmatprep.subr.mxu0 0.0
    %1074 = vmatpush1.msra.mxu0 0.0
    %1075 = vmatprep.subr.mxu0 0.0
    %1076 = vmatpush1.msra.mxu0 0.0
    %1077 = vmatprep.subr.mxu0 0.0
    %1078 = vmatpush1.msra.mxu0 0.0
    %1079 = vmatprep.mubr.f32.mxu0 0.0
    %1080 = vmatmul.mubr.f32.gmra.mrb[0].mxu0 %v1004
    %v1081 = vpop.f32.mrb[0].mxu0
    %v1082 = vadd.f32 %v985, %v1081
    %v1083 = vpop.f32.mrb[0].mxu0
    %1084 = vmatprep.mubr.f32.mxu0 0.0
    %1085 = vmatmul.mubr.f32.gmra.mrb[0].mxu0 %v1007
    %v1086 = vpop.f32.mrb[0].mxu0
    %v1087 = vadd.f32 %v990, %v1086
    %v1088 = vpop.f32.mrb[0].mxu0
    %1089 = vmatprep.mubr.f32.mxu0 0.0
    %1090 = vmatmul.mubr.f32.gmra.mrb[0].mxu0 %v1010
    %v1091 = vpop.f32.mrb[0].mxu0
    %v1092 = vadd.f32 %v995, %v1091
    %v1093 = vpop.f32.mrb[0].mxu0
    %1094 = vmatprep.mubr.f32.mxu0 0.0
    %1095 = vmatmul.mubr.f32.gmra.mrb[0].mxu0 %v1013
    %v1096 = vpop.f32.mrb[0].mxu0
    %v1097 = vadd.f32 %v1000, %v1096
    %v1098 = vpop.f32.mrb[0].mxu0
    %1099 = vdwg.mxu0
    %v1100 = vld [vmem:[%s4] sm:$0x1]
    %v1102 = vlaneseq
    %v1103 = vshrl.u32 %v1102, 7
    %v1104 = vsub.s32 0, %v1103
    %v1105 = vrot.slane %v1100, %v1104
    %v1107 = vadd.f32 %v1082, %v1105
    %v1108 = vadd.f32 %v1087, %v1105
    %v1109 = vadd.f32 %v1092, %v1105
    %v1110 = vadd.f32 %v1097, %v1105
    %v1111 = vmul.f32 %v1107, 0.5
    %v1112 = vmul.f32 %v1108, 0.5
    %v1113 = vmul.f32 %v1109, 0.5
    %v1114 = vmul.f32 %v1110, 0.5
    %v1115 = vmul.f32 %v1107, 0.70710677
    %v1116 = vmul.f32 %v1108, 0.70710677
    %v1117 = vmul.f32 %v1109, 0.70710677
    %v1118 = vmul.f32 %v1110, 0.70710677
    %v1119 = vand.u32 2147483647, %v1115
    %v1120 = vand.u32 2147483647, %v1116
    %v1121 = vand.u32 2147483647, %v1117
    %v1122 = vand.u32 2147483647, %v1118
    %v1123 = vmul.f32 %v1119, 0.3275911
    %v1124 = vmul.f32 %v1120, 0.3275911
    %v1125 = vmul.f32 %v1121, 0.3275911
    %v1126 = vmul.f32 %v1122, 0.3275911
    %v1127 = vadd.f32 %v1123, 1.0
    %v1128 = vadd.f32 %v1124, 1.0
    %v1129 = vadd.f32 %v1125, 1.0
    %v1130 = vadd.f32 %v1126, 1.0
    %v1131 = vrcp.pop %v1127
    %v1132 = vmul.f32 1.0, %v1131
    %v1133 = vrcp.pop %v1128
    %v1134 = vmul.f32 1.0, %v1133
    %v1135 = vrcp.pop %v1129
    %v1136 = vmul.f32 1.0, %v1135
    %v1137 = vrcp.pop %v1130
    %v1138 = vmul.f32 1.0, %v1137
    %v1139 = vmul.f32 %v1132, 1.0614054
    %v1140 = vmul.f32 %v1134, 1.0614054
    %v1141 = vmul.f32 %v1136, 1.0614054
    %v1142 = vmul.f32 %v1138, 1.0614054
    %v1143 = vadd.f32 %v1139, -1.4531521
    %v1144 = vadd.f32 %v1140, -1.4531521
    %v1145 = vadd.f32 %v1141, -1.4531521
    %v1146 = vadd.f32 %v1142, -1.4531521
    %v1147 = vmul.f32 %v1143, %v1132
    %v1148 = vmul.f32 %v1144, %v1134
    %v1149 = vmul.f32 %v1145, %v1136
    %v1150 = vmul.f32 %v1146, %v1138
    %v1151 = vadd.f32 %v1147, 1.4214138
    %v1152 = vadd.f32 %v1148, 1.4214138
    %v1153 = vadd.f32 %v1149, 1.4214138
    %v1154 = vadd.f32 %v1150, 1.4214138
    %v1155 = vmul.f32 %v1151, %v1132
    %v1156 = vmul.f32 %v1152, %v1134
    %v1157 = vmul.f32 %v1153, %v1136
    %v1158 = vmul.f32 %v1154, %v1138
    %v1159 = vadd.f32 %v1155, -0.28449672
    %v1160 = vadd.f32 %v1156, -0.28449672
    %v1161 = vadd.f32 %v1157, -0.28449672
    %v1162 = vadd.f32 %v1158, -0.28449672
    %v1163 = vmul.f32 %v1159, %v1132
    %v1164 = vmul.f32 %v1160, %v1134
    %v1165 = vmul.f32 %v1161, %v1136
    %v1166 = vmul.f32 %v1162, %v1138
    %v1167 = vadd.f32 %v1163, 0.2548296
    %v1168 = vadd.f32 %v1164, 0.2548296
    %v1169 = vadd.f32 %v1165, 0.2548296
    %v1170 = vadd.f32 %v1166, 0.2548296
    %v1171 = vmul.f32 %v1167, %v1132
    %v1172 = vmul.f32 %v1168, %v1134
    %v1173 = vmul.f32 %v1169, %v1136
    %v1174 = vmul.f32 %v1170, %v1138
    %v1175 = vsub.f32 0.0, %v1119
    %v1176 = vsub.f32 0.0, %v1120
    %v1177 = vsub.f32 0.0, %v1121
    %v1178 = vsub.f32 0.0, %v1122
    %v1179 = vmul.f32 %v1175, %v1119
    %v1180 = vmul.f32 %v1176, %v1120
    %v1181 = vmul.f32 %v1177, %v1121
    %v1182 = vmul.f32 %v1178, %v1122
    %v1183 = vmul.f32 %v1179, 1.442695
    %v1184 = vpow.pop %v1183
    %v1185 = vmul.f32 %v1180, 1.442695
    %v1186 = vpow.pop %v1185
    %v1187 = vmul.f32 %v1181, 1.442695
    %v1188 = vpow.pop %v1187
    %v1189 = vmul.f32 %v1182, 1.442695
    %v1190 = vpow.pop %v1189
    %v1191 = vmul.f32 %v1171, %v1184
    %v1192 = vmul.f32 %v1172, %v1186
    %v1193 = vmul.f32 %v1173, %v1188
    %v1194 = vmul.f32 %v1174, %v1190
    %v1195 = vsub.f32 1.0, %v1191
    %v1196 = vsub.f32 1.0, %v1192
    %v1197 = vsub.f32 1.0, %v1193
    %v1198 = vsub.f32 1.0, %v1194
    %vm1199 = vcmp.ge.f32.partialorder %v1115, 0.0
    %vm1200 = vcmp.ge.f32.partialorder %v1116, 0.0
    %vm1201 = vcmp.ge.f32.partialorder %v1117, 0.0
    %vm1202 = vcmp.ge.f32.partialorder %v1118, 0.0
    %v1203 = vsub.f32 0.0, %v1195
    %v1204 = vsub.f32 0.0, %v1196
    %v1205 = vsub.f32 0.0, %v1197
    %v1206 = vsub.f32 0.0, %v1198
    %v1207 = vsel %vm1199, %v1195, %v1203
    %v1208 = vsel %vm1200, %v1196, %v1204
    %v1209 = vsel %vm1201, %v1197, %v1205
    %v1210 = vsel %vm1202, %v1198, %v1206
    %v1211 = vadd.f32 %v1207, 1.0
    %v1212 = vadd.f32 %v1208, 1.0
    %v1213 = vadd.f32 %v1209, 1.0
    %v1214 = vadd.f32 %v1210, 1.0
    %v1215 = vmul.f32 %v1111, %v1211
    %v1216 = vmul.f32 %v1112, %v1212
    %v1217 = vmul.f32 %v1113, %v1213
    %v1218 = vmul.f32 %v1114, %v1214
    %v1219 = vld [vmem:[%s5] sm:$0xff]
    %v1220 = vld [vmem:[%s5 + $0x8] sm:$0xff]
    %v1221 = vld [vmem:[%s5 + $0x10] sm:$0xff]
    %v1222 = vld [vmem:[%s5 + $0x18] sm:$0xff]
    %vm1223 = vcmask 261120
    %v1225 = vsel %vm1223, %v1215, 0
    %v1228 = vsel %vm1223, %v1216, 0
    %v1231 = vsel %vm1223, %v1217, 0
    %v1234 = vsel %vm1223, %v1218, 0
    %1236 = vmatprep.subr.mxu0 0.0
    %1237 = vmatpush1.msra.mxu0 %v1219
    %1238 = vmatprep.subr.mxu0 0.0
    %1239 = vmatpush1.msra.mxu0 %v1220
    %1240 = vmatprep.subr.mxu0 0.0
    %1241 = vmatpush1.msra.mxu0 %v1221
    %1242 = vmatprep.subr.mxu0 0.0
    %1243 = vmatpush1.msra.mxu0 %v1222
    %1244 = vmatprep.subr.mxu0 0.0
    %1245 = vmatpush1.msra.mxu0 0.0
    %1246 = vmatprep.subr.mxu0 0.0
    %1247 = vmatpush1.msra.mxu0 0.0
    %1248 = vmatprep.subr.mxu0 0.0
    %1249 = vmatpush1.msra.mxu0 0.0
    %1250 = vmatprep.subr.mxu0 0.0
    %1251 = vmatpush1.msra.mxu0 0.0
    %1252 = vmatprep.subr.mxu0 0.0
    %1253 = vmatpush1.msra.mxu0 0.0
    %1254 = vmatprep.subr.mxu0 0.0
    %1255 = vmatpush1.msra.mxu0 0.0
    %1256 = vmatprep.subr.mxu0 0.0
    %1257 = vmatpush1.msra.mxu0 0.0
    %1258 = vmatprep.subr.mxu0 0.0
    %1259 = vmatpush1.msra.mxu0 0.0
    %1260 = vmatprep.subr.mxu0 0.0
    %1261 = vmatpush1.msra.mxu0 0.0
    %1262 = vmatprep.subr.mxu0 0.0
    %1263 = vmatpush1.msra.mxu0 0.0
    %1264 = vmatprep.subr.mxu0 0.0
    %1265 = vmatpush1.msra.mxu0 0.0
    %1266 = vmatprep.subr.mxu0 0.0
    %1267 = vmatpush1.msra.mxu0 0.0
    %1268 = vmatprep.subr.mxu0 0.0
    %1269 = vmatpush1.msra.mxu0 0.0
    %1270 = vmatprep.subr.mxu0 0.0
    %1271 = vmatpush1.msra.mxu0 0.0
    %1272 = vmatprep.subr.mxu0 0.0
    %1273 = vmatpush1.msra.mxu0 0.0
    %1274 = vmatprep.subr.mxu0 0.0
    %1275 = vmatpush1.msra.mxu0 0.0
    %1276 = vmatprep.subr.mxu0 0.0
    %1277 = vmatpush1.msra.mxu0 0.0
    %1278 = vmatprep.subr.mxu0 0.0
    %1279 = vmatpush1.msra.mxu0 0.0
    %1280 = vmatprep.subr.mxu0 0.0
    %1281 = vmatpush1.msra.mxu0 0.0
    %1282 = vmatprep.subr.mxu0 0.0
    %1283 = vmatpush1.msra.mxu0 0.0
    %1284 = vmatprep.subr.mxu0 0.0
    %1285 = vmatpush1.msra.mxu0 0.0
    %1286 = vmatprep.subr.mxu0 0.0
    %1287 = vmatpush1.msra.mxu0 0.0
    %1288 = vmatprep.subr.mxu0 0.0
    %1289 = vmatpush1.msra.mxu0 0.0
    %1290 = vmatprep.subr.mxu0 0.0
    %1291 = vmatpush1.msra.mxu0 0.0
    %1292 = vmatprep.subr.mxu0 0.0
    %1293 = vmatpush1.msra.mxu0 0.0
    %1294 = vmatprep.subr.mxu0 0.0
    %1295 = vmatpush1.msra.mxu0 0.0
    %1296 = vmatprep.subr.mxu0 0.0
    %1297 = vmatpush1.msra.mxu0 0.0
    %1298 = vmatprep.subr.mxu0 0.0
    %1299 = vmatpush1.msra.mxu0 0.0
    %1300 = vmatprep.mubr.f32.mxu0 0.0
    %1301 = vmatmul.mubr.f32.gmra.mrb[0].mxu0 %v1225
    %v1302 = vpop.f32.mrb[0].mxu0
    %v1303 = vadd.f32 0.0, %v1302
    %v1304 = vpop.f32.mrb[0].mxu0
    %1305 = vmatprep.mubr.f32.mxu0 0.0
    %1306 = vmatmul.mubr.f32.gmra.mrb[0].mxu0 %v1228
    %v1307 = vpop.f32.mrb[0].mxu0
    %v1308 = vadd.f32 0.0, %v1307
    %v1309 = vpop.f32.mrb[0].mxu0
    %1310 = vmatprep.mubr.f32.mxu0 0.0
    %1311 = vmatmul.mubr.f32.gmra.mrb[0].mxu0 %v1231
    %v1312 = vpop.f32.mrb[0].mxu0
    %v1313 = vadd.f32 0.0, %v1312
    %v1314 = vpop.f32.mrb[0].mxu0
    %1315 = vmatprep.mubr.f32.mxu0 0.0
    %1316 = vmatmul.mubr.f32.gmra.mrb[0].mxu0 %v1234
    %v1317 = vpop.f32.mrb[0].mxu0
    %v1318 = vadd.f32 0.0, %v1317
    %v1319 = vpop.f32.mrb[0].mxu0
    %1320 = vdwg.mxu0
    %1321 = vst [vmem:[#allocation5] sm:$0xff] %v1303
    %1322 = vst [vmem:[#allocation5 + $0x8] sm:$0xff] %v1308
    %1323 = vst [vmem:[#allocation5 + $0x10] sm:$0xff] %v1313
    %1324 = vst [vmem:[#allocation5 + $0x18] sm:$0xff] %v1318
    // Predicated region
    $region30: #{tpu_custom_call.1} parent=1 // pred_check
      _
    $region31: #{tpu_custom_call.1} parent=1 // pred_check_branch
      %1326 = sbr.rel (0) target = $region33
    $region32: #{tpu_custom_call.1} parent=1 // pred_region
      %s1328 = ssub.s32 512, 512
      %1329 = vsyncadd [#allocation4], %s1328
      %s1330 = sshll.u32 [#allocation5], 4
      %s1331 = int_to_ptr.vmem [resolvable:$true] %s1330
      %1336 = dma.vmem_to_hbm [thread:$0]  %s1331, 512, %s6, [#allocation4], 128, 128, 8
    $region33: #{tpu_custom_call.1} parent=1 // pred_fallthru
      _
    // Predicated region
    $region34: #{tpu_custom_call.1} parent=1 // pred_check
      _
    $region35: #{tpu_custom_call.1} parent=1 // pred_check_branch
      %1338 = sbr.rel (0) target = $region37
    $region36: #{tpu_custom_call.1} parent=1 // pred_region
      %1339 = dma.done [#allocation4], 512
    $region37: #{tpu_custom_call.1} parent=1 // pred_fallthru
      _
    %1340 = vsyncpa [#allocation3], 1
    %1341 = vsyncpa [#allocation4], 1

</llo_original>
